<compile_context>
chip_gen: v7x
topology: tpu7x:2x2x1
jax: 0.10.0
libtpu: 0.0.40
codegen_flags: <defaults>
</compile_context>

<pallas_src>
import jax
import jax.numpy as jnp
from jax.experimental import pallas as pl
from jax.experimental.pallas import tpu as pltpu

BN_EPS = 1e-5


def _round_up(x, m):
    return (x + m - 1) // m * m


# ----------------------------------------------------------------------------
# Kernel
# ----------------------------------------------------------------------------
def dnn_kernel(x_ref,
               w1, w2, w3, w4, w5, w6,
               b1, b2, b3, b4, b5, b6,
               o_ref):
    """Fused 6-layer MLP on one batch tile.

    x_ref:  [TILE_B, F_in_pad]  bf16
    w*:     [K_pad, N_pad]      bf16 (BN already folded into w1..w5 / b1..b5)
    b*:     [1, N_pad]          f32
    o_ref:  [TILE_B, O_pad]     f32
    """
    def layer(h_bf16, w_ref, b_ref):
        acc = jnp.dot(h_bf16, w_ref[...], preferred_element_type=jnp.float32)
        return acc + b_ref[...]          # f32 bias add (keep VPU math in f32)

    h = x_ref[...]
    h = layer(h, w1, b1).astype(jnp.bfloat16)
    h = layer(h, w2, b2).astype(jnp.bfloat16)
    h = layer(h, w3, b3).astype(jnp.bfloat16)
    h = layer(h, w4, b4).astype(jnp.bfloat16)
    h = layer(h, w5, b5).astype(jnp.bfloat16)
    out = layer(h, w6, b6)               # final Linear: no BN / act / dropout
    o_ref[...] = out.astype(o_ref.dtype)


# ----------------------------------------------------------------------------
# Wrapper
# ----------------------------------------------------------------------------
def dnn_forward(x, ws, bs, *, tile_b=256):
    """x: [B, input_dim]. ws: 6 padded bf16 weights [K_pad, N_pad] (BN folded).
    bs: 6 padded f32 biases [1, N_pad]. Returns [B, O_pad] f32 (caller slices
    off the feature padding)."""
    B = x.shape[0]
    f_in_pad = ws[0].shape[0]
    out_pad = ws[-1].shape[1]

    # Batch padding / tiling (sublane multiple of 8, tile_b rows per grid step).
    b_pad = _round_up(max(B, 8), 8)
    if b_pad <= tile_b:
        tile_b = b_pad
    else:
        b_pad = _round_up(b_pad, tile_b)

    xp = jnp.zeros((b_pad, f_in_pad), jnp.bfloat16)
    xp = xp.at[:B, :x.shape[1]].set(x.astype(jnp.bfloat16))

    grid = (b_pad // tile_b,)

    in_specs = [pl.BlockSpec((tile_b, f_in_pad), lambda i: (i, 0))]
    in_specs += [pl.BlockSpec(w.shape, lambda i: (0, 0)) for w in ws]   # resident
    in_specs += [pl.BlockSpec(b.shape, lambda i: (0, 0)) for b in bs]   # resident
    out_specs = pl.BlockSpec((tile_b, out_pad), lambda i: (i, 0))

    # VMEM budget: resident weights/biases + double-buffered I/O tiles + f32 working set.
    weight_bytes = sum(w.size * w.dtype.itemsize for w in ws)
    bias_bytes = sum(b.size * b.dtype.itemsize for b in bs)
    io_tile_bytes = tile_b * f_in_pad * 2 + tile_b * out_pad * 4
    work_bytes = 6 * tile_b * max(w.shape[1] for w in ws) * 4
    vmem_budget = weight_bytes + bias_bytes + 2 * io_tile_bytes + work_bytes + (2 << 20)
    vmem_limit = int(min(max(vmem_budget, 16 << 20), 48 << 20))

    hid_pad = ws[1].shape[0]
    flops = 2 * b_pad * (f_in_pad * hid_pad + 4 * hid_pad * hid_pad + hid_pad * out_pad)
    bytes_accessed = (xp.size * 2 + weight_bytes + bias_bytes + b_pad * out_pad * 4)

    out = pl.pallas_call(
        dnn_kernel,
        out_shape=jax.ShapeDtypeStruct((b_pad, out_pad), jnp.float32),
        grid_spec=pltpu.PrefetchScalarGridSpec(
            num_scalar_prefetch=0,
            grid=grid,
            in_specs=in_specs,
            out_specs=out_specs),
        compiler_params=pltpu.CompilerParams(
            dimension_semantics=("parallel",),
            vmem_limit_bytes=vmem_limit),
        cost_estimate=pl.CostEstimate(
            flops=flops, transcendentals=0, bytes_accessed=bytes_accessed),
    )(xp, *ws, *bs)
    return out[:B]


# ----------------------------------------------------------------------------
# Parameters (matches DNN.__init__: xavier_normal weights, zero biases,
# default BatchNorm1d params/running stats, folded in eval mode, padded to 128)
# ----------------------------------------------------------------------------
def init_params(key, input_dim, hidden_dim, output_dim):
    f_in_p = _round_up(input_dim, 128)
    h_p = _round_up(hidden_dim, 128)
    o_p = _round_up(output_dim, 128)

    dims = ([(input_dim, hidden_dim, f_in_p, h_p)]
            + [(hidden_dim, hidden_dim, h_p, h_p)] * 4
            + [(hidden_dim, output_dim, h_p, o_p)])

    # BatchNorm1d (eval, default init): gamma=1, beta=0, mean=0, var=1
    bn_scale = 1.0 / jnp.sqrt(jnp.float32(1.0 + BN_EPS))
    bn_shift = jnp.float32(0.0)

    ws, bs = [], []
    for li, (fan_in, fan_out, kp, np_) in enumerate(dims):
        key, sub = jax.random.split(key)
        std = (2.0 / (fan_in + fan_out)) ** 0.5              # xavier_normal
        # PyTorch weight is [out, in]; stored transposed as [in, out].
        w = std * jax.random.normal(sub, (fan_in, fan_out), dtype=jnp.float32)
        b = jnp.zeros((fan_out,), jnp.float32)               # init.constant(bias, 0)
        if li < 5:                                            # fold eval-mode BN
            w = w * bn_scale
            b = b * bn_scale + bn_shift
        wp = jnp.zeros((kp, np_), jnp.float32).at[:fan_in, :fan_out].set(w)
        bp = jnp.zeros((1, np_), jnp.float32).at[0, :fan_out].set(b)
        ws.append(wp.astype(jnp.bfloat16))
        bs.append(bp)
    return ws, bs


def dnn_reference(x, ws, bs):
    """Pure-JAX reference mirroring the kernel numerics (bf16 MXU inputs,
    f32 accumulation / bias)."""
    B = x.shape[0]
    h = jnp.zeros((B, ws[0].shape[0]), jnp.bfloat16)
    h = h.at[:, :x.shape[1]].set(x.astype(jnp.bfloat16))
    h32 = None
    for i in range(6):
        h32 = jnp.dot(h, ws[i], preferred_element_type=jnp.float32) + bs[i]
        h = h32.astype(jnp.bfloat16)
    return h32


if __name__ == "__main__":
    batch, input_dim, hidden_dim, output_dim = 8, 32, 32, 16

    key = jax.random.PRNGKey(0)
    kx, kp = jax.random.split(key)
    x = jax.random.normal(kx, (batch, input_dim), dtype=jnp.float32)

    ws, bs = init_params(kp, input_dim, hidden_dim, output_dim)

    out_pad = jax.block_until_ready(dnn_forward(x, ws, bs))
    ref_pad = dnn_reference(x, ws, bs)

    out = out_pad[:, :output_dim]
    ref = ref_pad[:, :output_dim]

    assert out.shape == (batch, output_dim)
    assert jnp.allclose(out, ref, atol=1e-2, rtol=1e-2), "mismatch vs reference"

    print("KERNEL_OK")
</pallas_src>

<mosaic_0001>
module attributes {stable_mosaic.version = 11 : i64} {
  func.func @dnn_kernel(%arg0: i32, %arg1: memref<8x128xbf16, #tpu.memory_space<vmem>>, %arg2: memref<128x128xbf16, #tpu.memory_space<vmem>>, %arg3: memref<128x128xbf16, #tpu.memory_space<vmem>>, %arg4: memref<128x128xbf16, #tpu.memory_space<vmem>>, %arg5: memref<128x128xbf16, #tpu.memory_space<vmem>>, %arg6: memref<128x128xbf16, #tpu.memory_space<vmem>>, %arg7: memref<128x128xbf16, #tpu.memory_space<vmem>>, %arg8: memref<1x128xf32, #tpu.memory_space<vmem>>, %arg9: memref<1x128xf32, #tpu.memory_space<vmem>>, %arg10: memref<1x128xf32, #tpu.memory_space<vmem>>, %arg11: memref<1x128xf32, #tpu.memory_space<vmem>>, %arg12: memref<1x128xf32, #tpu.memory_space<vmem>>, %arg13: memref<1x128xf32, #tpu.memory_space<vmem>>, %arg14: memref<8x128xf32, #tpu.memory_space<vmem>>) attributes {dimension_semantics = [#tpu.dimension_semantics<parallel>], iteration_bounds = array<i64: 1>, scalar_prefetch = 0 : i64, scratch_operands = 0 : i64, tpu.core_type = #tpu.core_type<tc>, window_params = [{transform_indices = @transform_0, window_bounds = array<i64: 8, 128>}, {pipeline_mode = #tpu.pipeline_mode<synchronous>, transform_indices = @transform_1, window_bounds = array<i64: 128, 128>}, {pipeline_mode = #tpu.pipeline_mode<synchronous>, transform_indices = @transform_2, window_bounds = array<i64: 128, 128>}, {pipeline_mode = #tpu.pipeline_mode<synchronous>, transform_indices = @transform_3, window_bounds = array<i64: 128, 128>}, {pipeline_mode = #tpu.pipeline_mode<synchronous>, transform_indices = @transform_4, window_bounds = array<i64: 128, 128>}, {pipeline_mode = #tpu.pipeline_mode<synchronous>, transform_indices = @transform_5, window_bounds = array<i64: 128, 128>}, {pipeline_mode = #tpu.pipeline_mode<synchronous>, transform_indices = @transform_6, window_bounds = array<i64: 128, 128>}, {pipeline_mode = #tpu.pipeline_mode<synchronous>, transform_indices = @transform_7, window_bounds = array<i64: 1, 128>}, {pipeline_mode = #tpu.pipeline_mode<synchronous>, transform_indices = @transform_8, window_bounds = array<i64: 1, 128>}, {pipeline_mode = #tpu.pipeline_mode<synchronous>, transform_indices = @transform_9, window_bounds = array<i64: 1, 128>}, {pipeline_mode = #tpu.pipeline_mode<synchronous>, transform_indices = @transform_10, window_bounds = array<i64: 1, 128>}, {pipeline_mode = #tpu.pipeline_mode<synchronous>, transform_indices = @transform_11, window_bounds = array<i64: 1, 128>}, {pipeline_mode = #tpu.pipeline_mode<synchronous>, transform_indices = @transform_12, window_bounds = array<i64: 1, 128>}, {transform_indices = @transform_13, window_bounds = array<i64: 8, 128>}]} {
    %c0 = arith.constant 0 : index
    %c0_0 = arith.constant 0 : index
    %0 = vector.load %arg1[%c0, %c0_0] : memref<8x128xbf16, #tpu.memory_space<vmem>>, vector<8x128xbf16>
    %c0_1 = arith.constant 0 : index
    %c0_2 = arith.constant 0 : index
    %1 = vector.load %arg2[%c0_1, %c0_2] : memref<128x128xbf16, #tpu.memory_space<vmem>>, vector<128x128xbf16>
    %cst = arith.constant dense<0.000000e+00> : vector<8x128xf32>
    %2 = tpu.matmul %0, %1, %cst {dimension_numbers = #tpu.dot_dimension_numbers<[1], [0], [0], [1], [0, 0, 1, 1], [], []>} : vector<8x128xbf16>, vector<128x128xbf16>, vector<8x128xf32> -> vector<8x128xf32>
    %c0_3 = arith.constant 0 : index
    %c0_4 = arith.constant 0 : index
    %3 = vector.load %arg8[%c0_3, %c0_4] : memref<1x128xf32, #tpu.memory_space<vmem>>, vector<1x128xf32>
    %4 = vector.broadcast %3 : vector<1x128xf32> to vector<8x128xf32>
    %5 = arith.addf %2, %4 : vector<8x128xf32>
    %6 = arith.truncf %5 : vector<8x128xf32> to vector<8x128xbf16>
    %c0_5 = arith.constant 0 : index
    %c0_6 = arith.constant 0 : index
    %7 = vector.load %arg3[%c0_5, %c0_6] : memref<128x128xbf16, #tpu.memory_space<vmem>>, vector<128x128xbf16>
    %cst_7 = arith.constant dense<0.000000e+00> : vector<8x128xf32>
    %8 = tpu.matmul %6, %7, %cst_7 {dimension_numbers = #tpu.dot_dimension_numbers<[1], [0], [0], [1], [0, 0, 1, 1], [], []>} : vector<8x128xbf16>, vector<128x128xbf16>, vector<8x128xf32> -> vector<8x128xf32>
    %c0_8 = arith.constant 0 : index
    %c0_9 = arith.constant 0 : index
    %9 = vector.load %arg9[%c0_8, %c0_9] : memref<1x128xf32, #tpu.memory_space<vmem>>, vector<1x128xf32>
    %10 = vector.broadcast %9 : vector<1x128xf32> to vector<8x128xf32>
    %11 = arith.addf %8, %10 : vector<8x128xf32>
    %12 = arith.truncf %11 : vector<8x128xf32> to vector<8x128xbf16>
    %c0_10 = arith.constant 0 : index
    %c0_11 = arith.constant 0 : index
    %13 = vector.load %arg4[%c0_10, %c0_11] : memref<128x128xbf16, #tpu.memory_space<vmem>>, vector<128x128xbf16>
    %cst_12 = arith.constant dense<0.000000e+00> : vector<8x128xf32>
    %14 = tpu.matmul %12, %13, %cst_12 {dimension_numbers = #tpu.dot_dimension_numbers<[1], [0], [0], [1], [0, 0, 1, 1], [], []>} : vector<8x128xbf16>, vector<128x128xbf16>, vector<8x128xf32> -> vector<8x128xf32>
    %c0_13 = arith.constant 0 : index
    %c0_14 = arith.constant 0 : index
    %15 = vector.load %arg10[%c0_13, %c0_14] : memref<1x128xf32, #tpu.memory_space<vmem>>, vector<1x128xf32>
    %16 = vector.broadcast %15 : vector<1x128xf32> to vector<8x128xf32>
    %17 = arith.addf %14, %16 : vector<8x128xf32>
    %18 = arith.truncf %17 : vector<8x128xf32> to vector<8x128xbf16>
    %c0_15 = arith.constant 0 : index
    %c0_16 = arith.constant 0 : index
    %19 = vector.load %arg5[%c0_15, %c0_16] : memref<128x128xbf16, #tpu.memory_space<vmem>>, vector<128x128xbf16>
    %cst_17 = arith.constant dense<0.000000e+00> : vector<8x128xf32>
    %20 = tpu.matmul %18, %19, %cst_17 {dimension_numbers = #tpu.dot_dimension_numbers<[1], [0], [0], [1], [0, 0, 1, 1], [], []>} : vector<8x128xbf16>, vector<128x128xbf16>, vector<8x128xf32> -> vector<8x128xf32>
    %c0_18 = arith.constant 0 : index
    %c0_19 = arith.constant 0 : index
    %21 = vector.load %arg11[%c0_18, %c0_19] : memref<1x128xf32, #tpu.memory_space<vmem>>, vector<1x128xf32>
    %22 = vector.broadcast %21 : vector<1x128xf32> to vector<8x128xf32>
    %23 = arith.addf %20, %22 : vector<8x128xf32>
    %24 = arith.truncf %23 : vector<8x128xf32> to vector<8x128xbf16>
    %c0_20 = arith.constant 0 : index
    %c0_21 = arith.constant 0 : index
    %25 = vector.load %arg6[%c0_20, %c0_21] : memref<128x128xbf16, #tpu.memory_space<vmem>>, vector<128x128xbf16>
    %cst_22 = arith.constant dense<0.000000e+00> : vector<8x128xf32>
    %26 = tpu.matmul %24, %25, %cst_22 {dimension_numbers = #tpu.dot_dimension_numbers<[1], [0], [0], [1], [0, 0, 1, 1], [], []>} : vector<8x128xbf16>, vector<128x128xbf16>, vector<8x128xf32> -> vector<8x128xf32>
    %c0_23 = arith.constant 0 : index
    %c0_24 = arith.constant 0 : index
    %27 = vector.load %arg12[%c0_23, %c0_24] : memref<1x128xf32, #tpu.memory_space<vmem>>, vector<1x128xf32>
    %28 = vector.broadcast %27 : vector<1x128xf32> to vector<8x128xf32>
    %29 = arith.addf %26, %28 : vector<8x128xf32>
    %30 = arith.truncf %29 : vector<8x128xf32> to vector<8x128xbf16>
    %c0_25 = arith.constant 0 : index
    %c0_26 = arith.constant 0 : index
    %31 = vector.load %arg7[%c0_25, %c0_26] : memref<128x128xbf16, #tpu.memory_space<vmem>>, vector<128x128xbf16>
    %cst_27 = arith.constant dense<0.000000e+00> : vector<8x128xf32>
    %32 = tpu.matmul %30, %31, %cst_27 {dimension_numbers = #tpu.dot_dimension_numbers<[1], [0], [0], [1], [0, 0, 1, 1], [], []>} : vector<8x128xbf16>, vector<128x128xbf16>, vector<8x128xf32> -> vector<8x128xf32>
    %c0_28 = arith.constant 0 : index
    %c0_29 = arith.constant 0 : index
    %33 = vector.load %arg13[%c0_28, %c0_29] : memref<1x128xf32, #tpu.memory_space<vmem>>, vector<1x128xf32>
    %34 = vector.broadcast %33 : vector<1x128xf32> to vector<8x128xf32>
    %35 = arith.addf %32, %34 : vector<8x128xf32>
    %c0_30 = arith.constant 0 : index
    %c0_31 = arith.constant 0 : index
    %36 = vector.load %arg14[%c0_30, %c0_31] : memref<8x128xf32, #tpu.memory_space<vmem>>, vector<8x128xf32>
    tpu.vector_store %arg14[%c0_30, %c0_31], %35 {strides = array<i32>} : memref<8x128xf32, #tpu.memory_space<vmem>>, vector<8x128xf32>,
    return
  }
  func.func @transform_0(%arg0: i32) -> (i32, i32) {
    %c0_i32 = arith.constant 0 : i32
    %c0_i32_0 = arith.constant 0 : i32
    return %arg0, %c0_i32 : i32, i32
  }
  func.func @transform_1(%arg0: i32) -> (i32, i32) {
    %c0_i32 = arith.constant 0 : i32
    %c0_i32_0 = arith.constant 0 : i32
    %c0_i32_1 = arith.constant 0 : i32
    return %c0_i32, %c0_i32_0 : i32, i32
  }
  func.func @transform_2(%arg0: i32) -> (i32, i32) {
    %c0_i32 = arith.constant 0 : i32
    %c0_i32_0 = arith.constant 0 : i32
    %c0_i32_1 = arith.constant 0 : i32
    return %c0_i32, %c0_i32_0 : i32, i32
  }
  func.func @transform_3(%arg0: i32) -> (i32, i32) {
    %c0_i32 = arith.constant 0 : i32
    %c0_i32_0 = arith.constant 0 : i32
    %c0_i32_1 = arith.constant 0 : i32
    return %c0_i32, %c0_i32_0 : i32, i32
  }
  func.func @transform_4(%arg0: i32) -> (i32, i32) {
    %c0_i32 = arith.constant 0 : i32
    %c0_i32_0 = arith.constant 0 : i32
    %c0_i32_1 = arith.constant 0 : i32
    return %c0_i32, %c0_i32_0 : i32, i32
  }
  func.func @transform_5(%arg0: i32) -> (i32, i32) {
    %c0_i32 = arith.constant 0 : i32
    %c0_i32_0 = arith.constant 0 : i32
    %c0_i32_1 = arith.constant 0 : i32
    return %c0_i32, %c0_i32_0 : i32, i32
  }
  func.func @transform_6(%arg0: i32) -> (i32, i32) {
    %c0_i32 = arith.constant 0 : i32
    %c0_i32_0 = arith.constant 0 : i32
    %c0_i32_1 = arith.constant 0 : i32
    return %c0_i32, %c0_i32_0 : i32, i32
  }
  func.func @transform_7(%arg0: i32) -> (i32, i32) {
    %c0_i32 = arith.constant 0 : i32
    %c0_i32_0 = arith.constant 0 : i32
    %c0_i32_1 = arith.constant 0 : i32
    return %c0_i32, %c0_i32_0 : i32, i32
  }
  func.func @transform_8(%arg0: i32) -> (i32, i32) {
    %c0_i32 = arith.constant 0 : i32
    %c0_i32_0 = arith.constant 0 : i32
    %c0_i32_1 = arith.constant 0 : i32
    return %c0_i32, %c0_i32_0 : i32, i32
  }
  func.func @transform_9(%arg0: i32) -> (i32, i32) {
    %c0_i32 = arith.constant 0 : i32
    %c0_i32_0 = arith.constant 0 : i32
    %c0_i32_1 = arith.constant 0 : i32
    return %c0_i32, %c0_i32_0 : i32, i32
  }
  func.func @transform_10(%arg0: i32) -> (i32, i32) {
    %c0_i32 = arith.constant 0 : i32
    %c0_i32_0 = arith.constant 0 : i32
    %c0_i32_1 = arith.constant 0 : i32
    return %c0_i32, %c0_i32_0 : i32, i32
  }
  func.func @transform_11(%arg0: i32) -> (i32, i32) {
    %c0_i32 = arith.constant 0 : i32
    %c0_i32_0 = arith.constant 0 : i32
    %c0_i32_1 = arith.constant 0 : i32
    return %c0_i32, %c0_i32_0 : i32, i32
  }
  func.func @transform_12(%arg0: i32) -> (i32, i32) {
    %c0_i32 = arith.constant 0 : i32
    %c0_i32_0 = arith.constant 0 : i32
    %c0_i32_1 = arith.constant 0 : i32
    return %c0_i32, %c0_i32_0 : i32, i32
  }
  func.func @transform_13(%arg0: i32) -> (i32, i32) {
    %c0_i32 = arith.constant 0 : i32
    %c0_i32_0 = arith.constant 0 : i32
    return %arg0, %c0_i32 : i32, i32
  }
}

</mosaic_0001>

<llo_original>
// kernel: tpu_custom_call.1
$region0: #{tpu_custom_call.1}
  #allocation0 [shape = 'u32[]', space=smem, size = 0x4, offset = 0x4, fixed_abs, tag = 'smem constant byte address 0x4 - core index']
  #allocation1 [shape = 'u32[144,128]{1,0:T(1,128)}', space=vmem, size = 0x12000, scoped, tag = 'internal scratch']
  %s0 = inlined_call_operand.hbm [shape: bf16[8,128], index: 0, kind: input, shape index: {}]
  %s1 = inlined_call_operand.hbm [shape: bf16[128,128], index: 1, kind: input, shape index: {}]
  %s2 = inlined_call_operand.hbm [shape: bf16[128,128], index: 2, kind: input, shape index: {}]
  %s3 = inlined_call_operand.hbm [shape: bf16[128,128], index: 3, kind: input, shape index: {}]
  %s4 = inlined_call_operand.hbm [shape: bf16[128,128], index: 4, kind: input, shape index: {}]
  %s5 = inlined_call_operand.hbm [shape: bf16[128,128], index: 5, kind: input, shape index: {}]
  %s6 = inlined_call_operand.hbm [shape: bf16[128,128], index: 6, kind: input, shape index: {}]
  %s7 = inlined_call_operand.vmem [shape: f32[1,128], index: 7, kind: input, shape index: {}]
  %s8 = inlined_call_operand.vmem [shape: f32[1,128], index: 8, kind: input, shape index: {}]
  %s9 = inlined_call_operand.vmem [shape: f32[1,128], index: 9, kind: input, shape index: {}]
  %s10 = inlined_call_operand.vmem [shape: f32[1,128], index: 10, kind: input, shape index: {}]
  %s11 = inlined_call_operand.vmem [shape: f32[1,128], index: 11, kind: input, shape index: {}]
  %s12 = inlined_call_operand.vmem [shape: f32[1,128], index: 12, kind: input, shape index: {}]
  %s13 = inlined_call_operand.hbm [shape: f32[8,128], index: 13, kind: output, shape index: {}]
  %s14 = sld [smem:[#allocation0]]
  $region90: #{tpu_custom_call.1} parent=0
    _
  %s16 = ssub.s32 1, %s14
  %s17 = scalar_select 0, %s16, %s14
  $region1: #{tpu_custom_call.1} parent=0
    #allocation2 [shape = 'u8[2048]{0}', space=vmem, size = 0x800, scoped, tag = 'input window, operand 0, single buffered']
    #allocation3 [shape = 's32[1]{0}', space=sflag, size = 0x4, scoped, tag = 'scoped memory for tpu_custom_call.1']
    #allocation4 [shape = 's32[1]{0}', space=sflag, size = 0x4, scoped, tag = 'scoped memory for tpu_custom_call.1']
    #allocation5 [shape = 'u8[32768]{0}', space=vmem, size = 0x8000, scoped, tag = 'input window, operand 1, single buffered']
    #allocation6 [shape = 's32[1]{0}', space=sflag, size = 0x4, scoped, tag = 'scoped memory for tpu_custom_call.1']
    #allocation7 [shape = 'u8[32768]{0}', space=vmem, size = 0x8000, scoped, tag = 'input window, operand 2, single buffered']
    #allocation8 [shape = 'u8[32768]{0}', space=vmem, size = 0x8000, scoped, tag = 'input window, operand 3, single buffered']
    #allocation9 [shape = 's32[1]{0}', space=sflag, size = 0x4, scoped, tag = 'scoped memory for tpu_custom_call.1']
    #allocation10 [shape = 'u8[32768]{0}', space=vmem, size = 0x8000, scoped, tag = 'input window, operand 4, single buffered']
    #allocation11 [shape = 'u8[32768]{0}', space=vmem, size = 0x8000, scoped, tag = 'input window, operand 5, single buffered']
    #allocation12 [shape = 's32[1]{0}', space=sflag, size = 0x4, scoped, tag = 'scoped memory for tpu_custom_call.1']
    #allocation13 [shape = 'u8[32768]{0}', space=vmem, size = 0x8000, scoped, tag = 'input window, operand 6, single buffered']
    #allocation14 [shape = 'u8[4096]{0}', space=vmem, size = 0x1000, scoped, tag = 'output window, operand 0, single buffered']
    %18 = vsyncpa [#allocation3], 0
    %19 = vsyncpa [#allocation6], 0
    %20 = vsyncpa [#allocation9], 0
    %21 = vsyncpa [#allocation12], 0
    %22 = vsyncpa [#allocation4], 0
    // Predicated region
    $region2: #{tpu_custom_call.1} parent=1 // pred_check
      _
    $region3: #{tpu_custom_call.1} parent=1 // pred_check_branch
      %24 = sbr.rel (0) target = $region5
    $region4: #{tpu_custom_call.1} parent=1 // pred_region
      %s26 = ssub.s32 64, 64
      %27 = vsyncadd [#allocation3], %s26
      %s29 = sshll.u32 [#allocation2], 4
      %s30 = int_to_ptr.vmem [resolvable:$true] %s29
      %32 = dma.hbm_to_vmem [thread:$0]  %s0, 64, %s30, [#allocation3]
    $region5: #{tpu_custom_call.1} parent=1 // pred_fallthru
      _
    // Predicated region
    $region6: #{tpu_custom_call.1} parent=1 // pred_check
      _
    $region7: #{tpu_custom_call.1} parent=1 // pred_check_branch
      %34 = sbr.rel (0) target = $region9
    $region8: #{tpu_custom_call.1} parent=1 // pred_region
      %s36 = ssub.s32 1024, 1024
      %37 = vsyncadd [#allocation6], %s36
      %s38 = sshll.u32 [#allocation5], 4
      %s39 = int_to_ptr.vmem [resolvable:$true] %s38
      %44 = dma.hbm_to_vmem [thread:$0]  %s1, 1024, %s39, [#allocation6], 64, 64, 4
    $region9: #{tpu_custom_call.1} parent=1 // pred_fallthru
      _
    // Predicated region
    $region10: #{tpu_custom_call.1} parent=1 // pred_check
      _
    $region11: #{tpu_custom_call.1} parent=1 // pred_check_branch
      %46 = sbr.rel (0) target = $region13
    $region12: #{tpu_custom_call.1} parent=1 // pred_region
      %s48 = ssub.s32 1024, 1024
      %49 = vsyncadd [#allocation6], %s48
      %s50 = sshll.u32 [#allocation7], 4
      %s51 = int_to_ptr.vmem [resolvable:$true] %s50
      %56 = dma.hbm_to_vmem [thread:$0]  %s2, 1024, %s51, [#allocation6], 64, 64, 4
    $region13: #{tpu_custom_call.1} parent=1 // pred_fallthru
      _
    // Predicated region
    $region14: #{tpu_custom_call.1} parent=1 // pred_check
      _
    $region15: #{tpu_custom_call.1} parent=1 // pred_check_branch
      %58 = sbr.rel (0) target = $region17
    $region16: #{tpu_custom_call.1} parent=1 // pred_region
      %s60 = ssub.s32 1024, 1024
      %61 = vsyncadd [#allocation9], %s60
      %s62 = sshll.u32 [#allocation8], 4
      %s63 = int_to_ptr.vmem [resolvable:$true] %s62
      %68 = dma.hbm_to_vmem [thread:$0]  %s3, 1024, %s63, [#allocation9], 64, 64, 4
    $region17: #{tpu_custom_call.1} parent=1 // pred_fallthru
      _
    // Predicated region
    $region18: #{tpu_custom_call.1} parent=1 // pred_check
      _
    $region19: #{tpu_custom_call.1} parent=1 // pred_check_branch
      %70 = sbr.rel (0) target = $region21
    $region20: #{tpu_custom_call.1} parent=1 // pred_region
      %s72 = ssub.s32 1024, 1024
      %73 = vsyncadd [#allocation9], %s72
      %s74 = sshll.u32 [#allocation10], 4
      %s75 = int_to_ptr.vmem [resolvable:$true] %s74
      %80 = dma.hbm_to_vmem [thread:$0]  %s4, 1024, %s75, [#allocation9], 64, 64, 4
    $region21: #{tpu_custom_call.1} parent=1 // pred_fallthru
      _
    // Predicated region
    $region22: #{tpu_custom_call.1} parent=1 // pred_check
      _
    $region23: #{tpu_custom_call.1} parent=1 // pred_check_branch
      %82 = sbr.rel (0) target = $region25
    $region24: #{tpu_custom_call.1} parent=1 // pred_region
      %s84 = ssub.s32 1024, 1024
      %85 = vsyncadd [#allocation12], %s84
      %s86 = sshll.u32 [#allocation11], 4
      %s87 = int_to_ptr.vmem [resolvable:$true] %s86
      %92 = dma.hbm_to_vmem [thread:$0]  %s5, 1024, %s87, [#allocation12], 64, 64, 4
    $region25: #{tpu_custom_call.1} parent=1 // pred_fallthru
      _
    // Predicated region
    $region26: #{tpu_custom_call.1} parent=1 // pred_check
      _
    $region27: #{tpu_custom_call.1} parent=1 // pred_check_branch
      %94 = sbr.rel (0) target = $region29
    $region28: #{tpu_custom_call.1} parent=1 // pred_region
      %s96 = ssub.s32 1024, 1024
      %97 = vsyncadd [#allocation12], %s96
      %s98 = sshll.u32 [#allocation13], 4
      %s99 = int_to_ptr.vmem [resolvable:$true] %s98
      %104 = dma.hbm_to_vmem [thread:$0]  %s6, 1024, %s99, [#allocation12], 64, 64, 4
    $region29: #{tpu_custom_call.1} parent=1 // pred_fallthru
      _
    // Predicated region
    $region30: #{tpu_custom_call.1} parent=1 // pred_check
      _
    $region31: #{tpu_custom_call.1} parent=1 // pred_check_branch
      %106 = sbr.rel (0) target = $region33
    $region32: #{tpu_custom_call.1} parent=1 // pred_region
      _
    $region33: #{tpu_custom_call.1} parent=1 // pred_fallthru
      _
    // Predicated region
    $region34: #{tpu_custom_call.1} parent=1 // pred_check
      _
    $region35: #{tpu_custom_call.1} parent=1 // pred_check_branch
      %108 = sbr.rel (0) target = $region37
    $region36: #{tpu_custom_call.1} parent=1 // pred_region
      _
    $region37: #{tpu_custom_call.1} parent=1 // pred_fallthru
      _
    // Predicated region
    $region38: #{tpu_custom_call.1} parent=1 // pred_check
      _
    $region39: #{tpu_custom_call.1} parent=1 // pred_check_branch
      %110 = sbr.rel (0) target = $region41
    $region40: #{tpu_custom_call.1} parent=1 // pred_region
      _
    $region41: #{tpu_custom_call.1} parent=1 // pred_fallthru
      _
    // Predicated region
    $region42: #{tpu_custom_call.1} parent=1 // pred_check
      _
    $region43: #{tpu_custom_call.1} parent=1 // pred_check_branch
      %112 = sbr.rel (0) target = $region45
    $region44: #{tpu_custom_call.1} parent=1 // pred_region
      _
    $region45: #{tpu_custom_call.1} parent=1 // pred_fallthru
      _
    // Predicated region
    $region46: #{tpu_custom_call.1} parent=1 // pred_check
      _
    $region47: #{tpu_custom_call.1} parent=1 // pred_check_branch
      %114 = sbr.rel (0) target = $region49
    $region48: #{tpu_custom_call.1} parent=1 // pred_region
      _
    $region49: #{tpu_custom_call.1} parent=1 // pred_fallthru
      _
    // Predicated region
    $region50: #{tpu_custom_call.1} parent=1 // pred_check
      _
    $region51: #{tpu_custom_call.1} parent=1 // pred_check_branch
      %116 = sbr.rel (0) target = $region53
    $region52: #{tpu_custom_call.1} parent=1 // pred_region
      _
    $region53: #{tpu_custom_call.1} parent=1 // pred_fallthru
      _
    // Predicated region
    $region54: #{tpu_custom_call.1} parent=1 // pred_check
      _
    $region55: #{tpu_custom_call.1} parent=1 // pred_check_branch
      %118 = sbr.rel (0) target = $region57
    $region56: #{tpu_custom_call.1} parent=1 // pred_region
      %119 = dma.done [#allocation3], 64
    $region57: #{tpu_custom_call.1} parent=1 // pred_fallthru
      _
    // Predicated region
    $region58: #{tpu_custom_call.1} parent=1 // pred_check
      _
    $region59: #{tpu_custom_call.1} parent=1 // pred_check_branch
      %121 = sbr.rel (0) target = $region61
    $region60: #{tpu_custom_call.1} parent=1 // pred_region
      %122 = dma.done [#allocation6], 1024
    $region61: #{tpu_custom_call.1} parent=1 // pred_fallthru
      _
    // Predicated region
    $region62: #{tpu_custom_call.1} parent=1 // pred_check
      _
    $region63: #{tpu_custom_call.1} parent=1 // pred_check_branch
      %124 = sbr.rel (0) target = $region65
    $region64: #{tpu_custom_call.1} parent=1 // pred_region
      %125 = dma.done [#allocation6], 1024
    $region65: #{tpu_custom_call.1} parent=1 // pred_fallthru
      _
    // Predicated region
    $region66: #{tpu_custom_call.1} parent=1 // pred_check
      _
    $region67: #{tpu_custom_call.1} parent=1 // pred_check_branch
      %127 = sbr.rel (0) target = $region69
    $region68: #{tpu_custom_call.1} parent=1 // pred_region
      %128 = dma.done [#allocation9], 1024
    $region69: #{tpu_custom_call.1} parent=1 // pred_fallthru
      _
    // Predicated region
    $region70: #{tpu_custom_call.1} parent=1 // pred_check
      _
    $region71: #{tpu_custom_call.1} parent=1 // pred_check_branch
      %130 = sbr.rel (0) target = $region73
    $region72: #{tpu_custom_call.1} parent=1 // pred_region
      %131 = dma.done [#allocation9], 1024
    $region73: #{tpu_custom_call.1} parent=1 // pred_fallthru
      _
    // Predicated region
    $region74: #{tpu_custom_call.1} parent=1 // pred_check
      _
    $region75: #{tpu_custom_call.1} parent=1 // pred_check_branch
      %133 = sbr.rel (0) target = $region77
    $region76: #{tpu_custom_call.1} parent=1 // pred_region
      %134 = dma.done [#allocation12], 1024
    $region77: #{tpu_custom_call.1} parent=1 // pred_fallthru
      _
    // Predicated region
    $region78: #{tpu_custom_call.1} parent=1 // pred_check
      _
    $region79: #{tpu_custom_call.1} parent=1 // pred_check_branch
      %136 = sbr.rel (0) target = $region81
    $region80: #{tpu_custom_call.1} parent=1 // pred_region
      %137 = dma.done [#allocation12], 1024
    $region81: #{tpu_custom_call.1} parent=1 // pred_fallthru
      _
    %v139 = vld [vmem:[#allocation2] sm:$0xf]
    %v140 = vld [vmem:[#allocation5] sm:$0xf]
    %v141 = vld [vmem:[#allocation5 + $0x4] sm:$0xf]
    %v142 = vld [vmem:[#allocation5 + $0x8] sm:$0xf]
    %v143 = vld [vmem:[#allocation5 + $0xc] sm:$0xf]
    %v144 = vld [vmem:[#allocation5 + $0x10] sm:$0xf]
    %v145 = vld [vmem:[#allocation5 + $0x14] sm:$0xf]
    %v146 = vld [vmem:[#allocation5 + $0x18] sm:$0xf]
    %v147 = vld [vmem:[#allocation5 + $0x1c] sm:$0xf]
    %v148 = vld [vmem:[#allocation5 + $0x20] sm:$0xf]
    %v149 = vld [vmem:[#allocation5 + $0x24] sm:$0xf]
    %v150 = vld [vmem:[#allocation5 + $0x28] sm:$0xf]
    %v151 = vld [vmem:[#allocation5 + $0x2c] sm:$0xf]
    %v152 = vld [vmem:[#allocation5 + $0x30] sm:$0xf]
    %v153 = vld [vmem:[#allocation5 + $0x34] sm:$0xf]
    %v154 = vld [vmem:[#allocation5 + $0x38] sm:$0xf]
    %v155 = vld [vmem:[#allocation5 + $0x3c] sm:$0xf]
    %v156 = vld [vmem:[%s7] sm:$0x1]
    %v158 = vlaneseq
    %v159 = vshrl.u32 %v158, 7
    %v160 = vsub.s32 0, %v159
    %v161 = vrot.slane %v156, %v160
    %v179 = vunpack.c.l.b16 %v140
    %v180 = vunpack.c.l.b16 %v141
    %v181 = vunpack.c.l.b16 %v142
    %v182 = vunpack.c.l.b16 %v143
    %v183 = vunpack.c.l.b16 %v144
    %v184 = vunpack.c.l.b16 %v145
    %v185 = vunpack.c.l.b16 %v146
    %v186 = vunpack.c.l.b16 %v147
    %v187 = vunpack.c.l.b16 %v148
    %v188 = vunpack.c.l.b16 %v149
    %v189 = vunpack.c.l.b16 %v150
    %v190 = vunpack.c.l.b16 %v151
    %v191 = vunpack.c.l.b16 %v152
    %v192 = vunpack.c.l.b16 %v153
    %v193 = vunpack.c.l.b16 %v154
    %v194 = vunpack.c.l.b16 %v155
    %v195 = vpack.c.b16 %v180, %v179
    %v196 = vpack.c.b16 %v182, %v181
    %v197 = vpack.c.b16 %v184, %v183
    %v198 = vpack.c.b16 %v186, %v185
    %v199 = vpack.c.b16 %v188, %v187
    %v200 = vpack.c.b16 %v190, %v189
    %v201 = vpack.c.b16 %v192, %v191
    %v202 = vpack.c.b16 %v194, %v193
    %211 = vmatprep.subr.bf16.mxu0 0
    %212 = vmatpush1.bf16.msra.mxu0 %v195
    %213 = vmatprep.subr.bf16.mxu0 0
    %214 = vmatpush1.bf16.msra.mxu0 %v196
    %215 = vmatprep.subr.bf16.mxu0 0
    %216 = vmatpush1.bf16.msra.mxu0 %v197
    %217 = vmatprep.subr.bf16.mxu0 0
    %218 = vmatpush1.bf16.msra.mxu0 %v198
    %219 = vmatprep.subr.bf16.mxu0 0
    %220 = vmatpush1.bf16.msra.mxu0 %v199
    %221 = vmatprep.subr.bf16.mxu0 0
    %222 = vmatpush1.bf16.msra.mxu0 %v200
    %223 = vmatprep.subr.bf16.mxu0 0
    %224 = vmatpush1.bf16.msra.mxu0 %v201
    %225 = vmatprep.subr.bf16.mxu0 0
    %226 = vmatpush1.bf16.msra.mxu0 %v202
    %227 = vmatprep.subr.bf16.mxu0 0
    %228 = vmatpush1.bf16.msra.mxu0 0
    %229 = vmatprep.subr.bf16.mxu0 0
    %230 = vmatpush1.bf16.msra.mxu0 0
    %231 = vmatprep.subr.bf16.mxu0 0
    %232 = vmatpush1.bf16.msra.mxu0 0
    %233 = vmatprep.subr.bf16.mxu0 0
    %234 = vmatpush1.bf16.msra.mxu0 0
    %235 = vmatprep.subr.bf16.mxu0 0
    %236 = vmatpush1.bf16.msra.mxu0 0
    %237 = vmatprep.subr.bf16.mxu0 0
    %238 = vmatpush1.bf16.msra.mxu0 0
    %239 = vmatprep.subr.bf16.mxu0 0
    %240 = vmatpush1.bf16.msra.mxu0 0
    %241 = vmatprep.subr.bf16.mxu0 0
    %242 = vmatpush1.bf16.msra.mxu0 0
    %243 = vmatprep.mubr.bf16.mxu0 0
    %244 = vmatmul.mubr.bf16.gmra.mrb[0].mxu0 %v139
    %v245 = vpop.f32.mrb[0].mxu0
    %v246 = vadd.f32 %v161, %v245
    %v247 = vpop.f32.mrb[0].mxu0
    %v248 = vpop.f32.mrb[0].mxu0
    %v249 = vpop.f32.mrb[0].mxu0
    %250 = vdwg.mxu0
    %v251 = vpack.c.bf16 %v246, %v246
    %v252 = vld [vmem:[#allocation7] sm:$0xf]
    %v253 = vld [vmem:[#allocation7 + $0x4] sm:$0xf]
    %v254 = vld [vmem:[#allocation7 + $0x8] sm:$0xf]
    %v255 = vld [vmem:[#allocation7 + $0xc] sm:$0xf]
    %v256 = vld [vmem:[#allocation7 + $0x10] sm:$0xf]
    %v257 = vld [vmem:[#allocation7 + $0x14] sm:$0xf]
    %v258 = vld [vmem:[#allocation7 + $0x18] sm:$0xf]
    %v259 = vld [vmem:[#allocation7 + $0x1c] sm:$0xf]
    %v260 = vld [vmem:[#allocation7 + $0x20] sm:$0xf]
    %v261 = vld [vmem:[#allocation7 + $0x24] sm:$0xf]
    %v262 = vld [vmem:[#allocation7 + $0x28] sm:$0xf]
    %v263 = vld [vmem:[#allocation7 + $0x2c] sm:$0xf]
    %v264 = vld [vmem:[#allocation7 + $0x30] sm:$0xf]
    %v265 = vld [vmem:[#allocation7 + $0x34] sm:$0xf]
    %v266 = vld [vmem:[#allocation7 + $0x38] sm:$0xf]
    %v267 = vld [vmem:[#allocation7 + $0x3c] sm:$0xf]
    %v268 = vld [vmem:[%s8] sm:$0x1]
    %v270 = vlaneseq
    %v271 = vshrl.u32 %v270, 7
    %v272 = vsub.s32 0, %v271
    %v273 = vrot.slane %v268, %v272
    %v291 = vunpack.c.l.b16 %v252
    %v292 = vunpack.c.l.b16 %v253
    %v293 = vunpack.c.l.b16 %v254
    %v294 = vunpack.c.l.b16 %v255
    %v295 = vunpack.c.l.b16 %v256
    %v296 = vunpack.c.l.b16 %v257
    %v297 = vunpack.c.l.b16 %v258
    %v298 = vunpack.c.l.b16 %v259
    %v299 = vunpack.c.l.b16 %v260
    %v300 = vunpack.c.l.b16 %v261
    %v301 = vunpack.c.l.b16 %v262
    %v302 = vunpack.c.l.b16 %v263
    %v303 = vunpack.c.l.b16 %v264
    %v304 = vunpack.c.l.b16 %v265
    %v305 = vunpack.c.l.b16 %v266
    %v306 = vunpack.c.l.b16 %v267
    %v307 = vpack.c.b16 %v292, %v291
    %v308 = vpack.c.b16 %v294, %v293
    %v309 = vpack.c.b16 %v296, %v295
    %v310 = vpack.c.b16 %v298, %v297
    %v311 = vpack.c.b16 %v300, %v299
    %v312 = vpack.c.b16 %v302, %v301
    %v313 = vpack.c.b16 %v304, %v303
    %v314 = vpack.c.b16 %v306, %v305
    %323 = vmatprep.subr.bf16.mxu0 0
    %324 = vmatpush1.bf16.msra.mxu0 %v307
    %325 = vmatprep.subr.bf16.mxu0 0
    %326 = vmatpush1.bf16.msra.mxu0 %v308
    %327 = vmatprep.subr.bf16.mxu0 0
    %328 = vmatpush1.bf16.msra.mxu0 %v309
    %329 = vmatprep.subr.bf16.mxu0 0
    %330 = vmatpush1.bf16.msra.mxu0 %v310
    %331 = vmatprep.subr.bf16.mxu0 0
    %332 = vmatpush1.bf16.msra.mxu0 %v311
    %333 = vmatprep.subr.bf16.mxu0 0
    %334 = vmatpush1.bf16.msra.mxu0 %v312
    %335 = vmatprep.subr.bf16.mxu0 0
    %336 = vmatpush1.bf16.msra.mxu0 %v313
    %337 = vmatprep.subr.bf16.mxu0 0
    %338 = vmatpush1.bf16.msra.mxu0 %v314
    %339 = vmatprep.subr.bf16.mxu0 0
    %340 = vmatpush1.bf16.msra.mxu0 0
    %341 = vmatprep.subr.bf16.mxu0 0
    %342 = vmatpush1.bf16.msra.mxu0 0
    %343 = vmatprep.subr.bf16.mxu0 0
    %344 = vmatpush1.bf16.msra.mxu0 0
    %345 = vmatprep.subr.bf16.mxu0 0
    %346 = vmatpush1.bf16.msra.mxu0 0
    %347 = vmatprep.subr.bf16.mxu0 0
    %348 = vmatpush1.bf16.msra.mxu0 0
    %349 = vmatprep.subr.bf16.mxu0 0
    %350 = vmatpush1.bf16.msra.mxu0 0
    %351 = vmatprep.subr.bf16.mxu0 0
    %352 = vmatpush1.bf16.msra.mxu0 0
    %353 = vmatprep.subr.bf16.mxu0 0
    %354 = vmatpush1.bf16.msra.mxu0 0
    %355 = vmatprep.mubr.bf16.mxu0 0
    %356 = vmatmul.mubr.bf16.gmra.mrb[0].mxu0 %v251
    %v357 = vpop.f32.mrb[0].mxu0
    %v358 = vadd.f32 %v273, %v357
    %v359 = vpop.f32.mrb[0].mxu0
    %v360 = vpop.f32.mrb[0].mxu0
    %v361 = vpop.f32.mrb[0].mxu0
    %362 = vdwg.mxu0
    %v363 = vpack.c.bf16 %v358, %v358
    %v364 = vld [vmem:[#allocation8] sm:$0xf]
    %v365 = vld [vmem:[#allocation8 + $0x4] sm:$0xf]
    %v366 = vld [vmem:[#allocation8 + $0x8] sm:$0xf]
    %v367 = vld [vmem:[#allocation8 + $0xc] sm:$0xf]
    %v368 = vld [vmem:[#allocation8 + $0x10] sm:$0xf]
    %v369 = vld [vmem:[#allocation8 + $0x14] sm:$0xf]
    %v370 = vld [vmem:[#allocation8 + $0x18] sm:$0xf]
    %v371 = vld [vmem:[#allocation8 + $0x1c] sm:$0xf]
    %v372 = vld [vmem:[#allocation8 + $0x20] sm:$0xf]
    %v373 = vld [vmem:[#allocation8 + $0x24] sm:$0xf]
    %v374 = vld [vmem:[#allocation8 + $0x28] sm:$0xf]
    %v375 = vld [vmem:[#allocation8 + $0x2c] sm:$0xf]
    %v376 = vld [vmem:[#allocation8 + $0x30] sm:$0xf]
    %v377 = vld [vmem:[#allocation8 + $0x34] sm:$0xf]
    %v378 = vld [vmem:[#allocation8 + $0x38] sm:$0xf]
    %v379 = vld [vmem:[#allocation8 + $0x3c] sm:$0xf]
    %v380 = vld [vmem:[%s9] sm:$0x1]
    %v382 = vlaneseq
    %v383 = vshrl.u32 %v382, 7
    %v384 = vsub.s32 0, %v383
    %v385 = vrot.slane %v380, %v384
    %v403 = vunpack.c.l.b16 %v364
    %v404 = vunpack.c.l.b16 %v365
    %v405 = vunpack.c.l.b16 %v366
    %v406 = vunpack.c.l.b16 %v367
    %v407 = vunpack.c.l.b16 %v368
    %v408 = vunpack.c.l.b16 %v369
    %v409 = vunpack.c.l.b16 %v370
    %v410 = vunpack.c.l.b16 %v371
    %v411 = vunpack.c.l.b16 %v372
    %v412 = vunpack.c.l.b16 %v373
    %v413 = vunpack.c.l.b16 %v374
    %v414 = vunpack.c.l.b16 %v375
    %v415 = vunpack.c.l.b16 %v376
    %v416 = vunpack.c.l.b16 %v377
    %v417 = vunpack.c.l.b16 %v378
    %v418 = vunpack.c.l.b16 %v379
    %v419 = vpack.c.b16 %v404, %v403
    %v420 = vpack.c.b16 %v406, %v405
    %v421 = vpack.c.b16 %v408, %v407
    %v422 = vpack.c.b16 %v410, %v409
    %v423 = vpack.c.b16 %v412, %v411
    %v424 = vpack.c.b16 %v414, %v413
    %v425 = vpack.c.b16 %v416, %v415
    %v426 = vpack.c.b16 %v418, %v417
    %435 = vmatprep.subr.bf16.mxu0 0
    %436 = vmatpush1.bf16.msra.mxu0 %v419
    %437 = vmatprep.subr.bf16.mxu0 0
    %438 = vmatpush1.bf16.msra.mxu0 %v420
    %439 = vmatprep.subr.bf16.mxu0 0
    %440 = vmatpush1.bf16.msra.mxu0 %v421
    %441 = vmatprep.subr.bf16.mxu0 0
    %442 = vmatpush1.bf16.msra.mxu0 %v422
    %443 = vmatprep.subr.bf16.mxu0 0
    %444 = vmatpush1.bf16.msra.mxu0 %v423
    %445 = vmatprep.subr.bf16.mxu0 0
    %446 = vmatpush1.bf16.msra.mxu0 %v424
    %447 = vmatprep.subr.bf16.mxu0 0
    %448 = vmatpush1.bf16.msra.mxu0 %v425
    %449 = vmatprep.subr.bf16.mxu0 0
    %450 = vmatpush1.bf16.msra.mxu0 %v426
    %451 = vmatprep.subr.bf16.mxu0 0
    %452 = vmatpush1.bf16.msra.mxu0 0
    %453 = vmatprep.subr.bf16.mxu0 0
    %454 = vmatpush1.bf16.msra.mxu0 0
    %455 = vmatprep.subr.bf16.mxu0 0
    %456 = vmatpush1.bf16.msra.mxu0 0
    %457 = vmatprep.subr.bf16.mxu0 0
    %458 = vmatpush1.bf16.msra.mxu0 0
    %459 = vmatprep.subr.bf16.mxu0 0
    %460 = vmatpush1.bf16.msra.mxu0 0
    %461 = vmatprep.subr.bf16.mxu0 0
    %462 = vmatpush1.bf16.msra.mxu0 0
    %463 = vmatprep.subr.bf16.mxu0 0
    %464 = vmatpush1.bf16.msra.mxu0 0
    %465 = vmatprep.subr.bf16.mxu0 0
    %466 = vmatpush1.bf16.msra.mxu0 0
    %467 = vmatprep.mubr.bf16.mxu0 0
    %468 = vmatmul.mubr.bf16.gmra.mrb[0].mxu0 %v363
    %v469 = vpop.f32.mrb[0].mxu0
    %v470 = vadd.f32 %v385, %v469
    %v471 = vpop.f32.mrb[0].mxu0
    %v472 = vpop.f32.mrb[0].mxu0
    %v473 = vpop.f32.mrb[0].mxu0
    %474 = vdwg.mxu0
    %v475 = vpack.c.bf16 %v470, %v470
    %v476 = vld [vmem:[#allocation10] sm:$0xf]
    %v477 = vld [vmem:[#allocation10 + $0x4] sm:$0xf]
    %v478 = vld [vmem:[#allocation10 + $0x8] sm:$0xf]
    %v479 = vld [vmem:[#allocation10 + $0xc] sm:$0xf]
    %v480 = vld [vmem:[#allocation10 + $0x10] sm:$0xf]
    %v481 = vld [vmem:[#allocation10 + $0x14] sm:$0xf]
    %v482 = vld [vmem:[#allocation10 + $0x18] sm:$0xf]
    %v483 = vld [vmem:[#allocation10 + $0x1c] sm:$0xf]
    %v484 = vld [vmem:[#allocation10 + $0x20] sm:$0xf]
    %v485 = vld [vmem:[#allocation10 + $0x24] sm:$0xf]
    %v486 = vld [vmem:[#allocation10 + $0x28] sm:$0xf]
    %v487 = vld [vmem:[#allocation10 + $0x2c] sm:$0xf]
    %v488 = vld [vmem:[#allocation10 + $0x30] sm:$0xf]
    %v489 = vld [vmem:[#allocation10 + $0x34] sm:$0xf]
    %v490 = vld [vmem:[#allocation10 + $0x38] sm:$0xf]
    %v491 = vld [vmem:[#allocation10 + $0x3c] sm:$0xf]
    %v492 = vld [vmem:[%s10] sm:$0x1]
    %v494 = vlaneseq
    %v495 = vshrl.u32 %v494, 7
    %v496 = vsub.s32 0, %v495
    %v497 = vrot.slane %v492, %v496
    %v515 = vunpack.c.l.b16 %v476
    %v516 = vunpack.c.l.b16 %v477
    %v517 = vunpack.c.l.b16 %v478
    %v518 = vunpack.c.l.b16 %v479
    %v519 = vunpack.c.l.b16 %v480
    %v520 = vunpack.c.l.b16 %v481
    %v521 = vunpack.c.l.b16 %v482
    %v522 = vunpack.c.l.b16 %v483
    %v523 = vunpack.c.l.b16 %v484
    %v524 = vunpack.c.l.b16 %v485
    %v525 = vunpack.c.l.b16 %v486
    %v526 = vunpack.c.l.b16 %v487
    %v527 = vunpack.c.l.b16 %v488
    %v528 = vunpack.c.l.b16 %v489
    %v529 = vunpack.c.l.b16 %v490
    %v530 = vunpack.c.l.b16 %v491
    %v531 = vpack.c.b16 %v516, %v515
    %v532 = vpack.c.b16 %v518, %v517
    %v533 = vpack.c.b16 %v520, %v519
    %v534 = vpack.c.b16 %v522, %v521
    %v535 = vpack.c.b16 %v524, %v523
    %v536 = vpack.c.b16 %v526, %v525
    %v537 = vpack.c.b16 %v528, %v527
    %v538 = vpack.c.b16 %v530, %v529
    %547 = vmatprep.subr.bf16.mxu0 0
    %548 = vmatpush1.bf16.msra.mxu0 %v531
    %549 = vmatprep.subr.bf16.mxu0 0
    %550 = vmatpush1.bf16.msra.mxu0 %v532
    %551 = vmatprep.subr.bf16.mxu0 0
    %552 = vmatpush1.bf16.msra.mxu0 %v533
    %553 = vmatprep.subr.bf16.mxu0 0
    %554 = vmatpush1.bf16.msra.mxu0 %v534
    %555 = vmatprep.subr.bf16.mxu0 0
    %556 = vmatpush1.bf16.msra.mxu0 %v535
    %557 = vmatprep.subr.bf16.mxu0 0
    %558 = vmatpush1.bf16.msra.mxu0 %v536
    %559 = vmatprep.subr.bf16.mxu0 0
    %560 = vmatpush1.bf16.msra.mxu0 %v537
    %561 = vmatprep.subr.bf16.mxu0 0
    %562 = vmatpush1.bf16.msra.mxu0 %v538
    %563 = vmatprep.subr.bf16.mxu0 0
    %564 = vmatpush1.bf16.msra.mxu0 0
    %565 = vmatprep.subr.bf16.mxu0 0
    %566 = vmatpush1.bf16.msra.mxu0 0
    %567 = vmatprep.subr.bf16.mxu0 0
    %568 = vmatpush1.bf16.msra.mxu0 0
    %569 = vmatprep.subr.bf16.mxu0 0
    %570 = vmatpush1.bf16.msra.mxu0 0
    %571 = vmatprep.subr.bf16.mxu0 0
    %572 = vmatpush1.bf16.msra.mxu0 0
    %573 = vmatprep.subr.bf16.mxu0 0
    %574 = vmatpush1.bf16.msra.mxu0 0
    %575 = vmatprep.subr.bf16.mxu0 0
    %576 = vmatpush1.bf16.msra.mxu0 0
    %577 = vmatprep.subr.bf16.mxu0 0
    %578 = vmatpush1.bf16.msra.mxu0 0
    %579 = vmatprep.mubr.bf16.mxu0 0
    %580 = vmatmul.mubr.bf16.gmra.mrb[0].mxu0 %v475
    %v581 = vpop.f32.mrb[0].mxu0
    %v582 = vadd.f32 %v497, %v581
    %v583 = vpop.f32.mrb[0].mxu0
    %v584 = vpop.f32.mrb[0].mxu0
    %v585 = vpop.f32.mrb[0].mxu0
    %586 = vdwg.mxu0
    %v587 = vpack.c.bf16 %v582, %v582
    %v588 = vld [vmem:[#allocation11] sm:$0xf]
    %v589 = vld [vmem:[#allocation11 + $0x4] sm:$0xf]
    %v590 = vld [vmem:[#allocation11 + $0x8] sm:$0xf]
    %v591 = vld [vmem:[#allocation11 + $0xc] sm:$0xf]
    %v592 = vld [vmem:[#allocation11 + $0x10] sm:$0xf]
    %v593 = vld [vmem:[#allocation11 + $0x14] sm:$0xf]
    %v594 = vld [vmem:[#allocation11 + $0x18] sm:$0xf]
    %v595 = vld [vmem:[#allocation11 + $0x1c] sm:$0xf]
    %v596 = vld [vmem:[#allocation11 + $0x20] sm:$0xf]
    %v597 = vld [vmem:[#allocation11 + $0x24] sm:$0xf]
    %v598 = vld [vmem:[#allocation11 + $0x28] sm:$0xf]
    %v599 = vld [vmem:[#allocation11 + $0x2c] sm:$0xf]
    %v600 = vld [vmem:[#allocation11 + $0x30] sm:$0xf]
    %v601 = vld [vmem:[#allocation11 + $0x34] sm:$0xf]
    %v602 = vld [vmem:[#allocation11 + $0x38] sm:$0xf]
    %v603 = vld [vmem:[#allocation11 + $0x3c] sm:$0xf]
    %v604 = vld [vmem:[%s11] sm:$0x1]
    %v606 = vlaneseq
    %v607 = vshrl.u32 %v606, 7
    %v608 = vsub.s32 0, %v607
    %v609 = vrot.slane %v604, %v608
    %v627 = vunpack.c.l.b16 %v588
    %v628 = vunpack.c.l.b16 %v589
    %v629 = vunpack.c.l.b16 %v590
    %v630 = vunpack.c.l.b16 %v591
    %v631 = vunpack.c.l.b16 %v592
    %v632 = vunpack.c.l.b16 %v593
    %v633 = vunpack.c.l.b16 %v594
    %v634 = vunpack.c.l.b16 %v595
    %v635 = vunpack.c.l.b16 %v596
    %v636 = vunpack.c.l.b16 %v597
    %v637 = vunpack.c.l.b16 %v598
    %v638 = vunpack.c.l.b16 %v599
    %v639 = vunpack.c.l.b16 %v600
    %v640 = vunpack.c.l.b16 %v601
    %v641 = vunpack.c.l.b16 %v602
    %v642 = vunpack.c.l.b16 %v603
    %v643 = vpack.c.b16 %v628, %v627
    %v644 = vpack.c.b16 %v630, %v629
    %v645 = vpack.c.b16 %v632, %v631
    %v646 = vpack.c.b16 %v634, %v633
    %v647 = vpack.c.b16 %v636, %v635
    %v648 = vpack.c.b16 %v638, %v637
    %v649 = vpack.c.b16 %v640, %v639
    %v650 = vpack.c.b16 %v642, %v641
    %659 = vmatprep.subr.bf16.mxu0 0
    %660 = vmatpush1.bf16.msra.mxu0 %v643
    %661 = vmatprep.subr.bf16.mxu0 0
    %662 = vmatpush1.bf16.msra.mxu0 %v644
    %663 = vmatprep.subr.bf16.mxu0 0
    %664 = vmatpush1.bf16.msra.mxu0 %v645
    %665 = vmatprep.subr.bf16.mxu0 0
    %666 = vmatpush1.bf16.msra.mxu0 %v646
    %667 = vmatprep.subr.bf16.mxu0 0
    %668 = vmatpush1.bf16.msra.mxu0 %v647
    %669 = vmatprep.subr.bf16.mxu0 0
    %670 = vmatpush1.bf16.msra.mxu0 %v648
    %671 = vmatprep.subr.bf16.mxu0 0
    %672 = vmatpush1.bf16.msra.mxu0 %v649
    %673 = vmatprep.subr.bf16.mxu0 0
    %674 = vmatpush1.bf16.msra.mxu0 %v650
    %675 = vmatprep.subr.bf16.mxu0 0
    %676 = vmatpush1.bf16.msra.mxu0 0
    %677 = vmatprep.subr.bf16.mxu0 0
    %678 = vmatpush1.bf16.msra.mxu0 0
    %679 = vmatprep.subr.bf16.mxu0 0
    %680 = vmatpush1.bf16.msra.mxu0 0
    %681 = vmatprep.subr.bf16.mxu0 0
    %682 = vmatpush1.bf16.msra.mxu0 0
    %683 = vmatprep.subr.bf16.mxu0 0
    %684 = vmatpush1.bf16.msra.mxu0 0
    %685 = vmatprep.subr.bf16.mxu0 0
    %686 = vmatpush1.bf16.msra.mxu0 0
    %687 = vmatprep.subr.bf16.mxu0 0
    %688 = vmatpush1.bf16.msra.mxu0 0
    %689 = vmatprep.subr.bf16.mxu0 0
    %690 = vmatpush1.bf16.msra.mxu0 0
    %691 = vmatprep.mubr.bf16.mxu0 0
    %692 = vmatmul.mubr.bf16.gmra.mrb[0].mxu0 %v587
    %v693 = vpop.f32.mrb[0].mxu0
    %v694 = vadd.f32 %v609, %v693
    %v695 = vpop.f32.mrb[0].mxu0
    %v696 = vpop.f32.mrb[0].mxu0
    %v697 = vpop.f32.mrb[0].mxu0
    %698 = vdwg.mxu0
    %v699 = vpack.c.bf16 %v694, %v694
    %v700 = vld [vmem:[#allocation13] sm:$0xf]
    %v701 = vld [vmem:[#allocation13 + $0x4] sm:$0xf]
    %v702 = vld [vmem:[#allocation13 + $0x8] sm:$0xf]
    %v703 = vld [vmem:[#allocation13 + $0xc] sm:$0xf]
    %v704 = vld [vmem:[#allocation13 + $0x10] sm:$0xf]
    %v705 = vld [vmem:[#allocation13 + $0x14] sm:$0xf]
    %v706 = vld [vmem:[#allocation13 + $0x18] sm:$0xf]
    %v707 = vld [vmem:[#allocation13 + $0x1c] sm:$0xf]
    %v708 = vld [vmem:[#allocation13 + $0x20] sm:$0xf]
    %v709 = vld [vmem:[#allocation13 + $0x24] sm:$0xf]
    %v710 = vld [vmem:[#allocation13 + $0x28] sm:$0xf]
    %v711 = vld [vmem:[#allocation13 + $0x2c] sm:$0xf]
    %v712 = vld [vmem:[#allocation13 + $0x30] sm:$0xf]
    %v713 = vld [vmem:[#allocation13 + $0x34] sm:$0xf]
    %v714 = vld [vmem:[#allocation13 + $0x38] sm:$0xf]
    %v715 = vld [vmem:[#allocation13 + $0x3c] sm:$0xf]
    %v716 = vld [vmem:[%s12] sm:$0x1]
    %v718 = vlaneseq
    %v719 = vshrl.u32 %v718, 7
    %v720 = vsub.s32 0, %v719
    %v721 = vrot.slane %v716, %v720
    %v739 = vunpack.c.l.b16 %v700
    %v740 = vunpack.c.l.b16 %v701
    %v741 = vunpack.c.l.b16 %v702
    %v742 = vunpack.c.l.b16 %v703
    %v743 = vunpack.c.l.b16 %v704
    %v744 = vunpack.c.l.b16 %v705
    %v745 = vunpack.c.l.b16 %v706
    %v746 = vunpack.c.l.b16 %v707
    %v747 = vunpack.c.l.b16 %v708
    %v748 = vunpack.c.l.b16 %v709
    %v749 = vunpack.c.l.b16 %v710
    %v750 = vunpack.c.l.b16 %v711
    %v751 = vunpack.c.l.b16 %v712
    %v752 = vunpack.c.l.b16 %v713
    %v753 = vunpack.c.l.b16 %v714
    %v754 = vunpack.c.l.b16 %v715
    %v755 = vpack.c.b16 %v740, %v739
    %v756 = vpack.c.b16 %v742, %v741
    %v757 = vpack.c.b16 %v744, %v743
    %v758 = vpack.c.b16 %v746, %v745
    %v759 = vpack.c.b16 %v748, %v747
    %v760 = vpack.c.b16 %v750, %v749
    %v761 = vpack.c.b16 %v752, %v751
    %v762 = vpack.c.b16 %v754, %v753
    %771 = vmatprep.subr.bf16.mxu0 0
    %772 = vmatpush1.bf16.msra.mxu0 %v755
    %773 = vmatprep.subr.bf16.mxu0 0
    %774 = vmatpush1.bf16.msra.mxu0 %v756
    %775 = vmatprep.subr.bf16.mxu0 0
    %776 = vmatpush1.bf16.msra.mxu0 %v757
    %777 = vmatprep.subr.bf16.mxu0 0
    %778 = vmatpush1.bf16.msra.mxu0 %v758
    %779 = vmatprep.subr.bf16.mxu0 0
    %780 = vmatpush1.bf16.msra.mxu0 %v759
    %781 = vmatprep.subr.bf16.mxu0 0
    %782 = vmatpush1.bf16.msra.mxu0 %v760
    %783 = vmatprep.subr.bf16.mxu0 0
    %784 = vmatpush1.bf16.msra.mxu0 %v761
    %785 = vmatprep.subr.bf16.mxu0 0
    %786 = vmatpush1.bf16.msra.mxu0 %v762
    %787 = vmatprep.subr.bf16.mxu0 0
    %788 = vmatpush1.bf16.msra.mxu0 0
    %789 = vmatprep.subr.bf16.mxu0 0
    %790 = vmatpush1.bf16.msra.mxu0 0
    %791 = vmatprep.subr.bf16.mxu0 0
    %792 = vmatpush1.bf16.msra.mxu0 0
    %793 = vmatprep.subr.bf16.mxu0 0
    %794 = vmatpush1.bf16.msra.mxu0 0
    %795 = vmatprep.subr.bf16.mxu0 0
    %796 = vmatpush1.bf16.msra.mxu0 0
    %797 = vmatprep.subr.bf16.mxu0 0
    %798 = vmatpush1.bf16.msra.mxu0 0
    %799 = vmatprep.subr.bf16.mxu0 0
    %800 = vmatpush1.bf16.msra.mxu0 0
    %801 = vmatprep.subr.bf16.mxu0 0
    %802 = vmatpush1.bf16.msra.mxu0 0
    %803 = vmatprep.mubr.bf16.mxu0 0
    %804 = vmatmul.mubr.bf16.gmra.mrb[0].mxu0 %v699
    %v805 = vpop.f32.mrb[0].mxu0
    %v806 = vadd.f32 %v721, %v805
    %v807 = vpop.f32.mrb[0].mxu0
    %v808 = vpop.f32.mrb[0].mxu0
    %v809 = vpop.f32.mrb[0].mxu0
    %810 = vdwg.mxu0
    %811 = vst [vmem:[#allocation14] sm:$0xff] %v806
    // Predicated region
    $region82: #{tpu_custom_call.1} parent=1 // pred_check
      _
    $region83: #{tpu_custom_call.1} parent=1 // pred_check_branch
      %813 = sbr.rel (0) target = $region85
    $region84: #{tpu_custom_call.1} parent=1 // pred_region
      %s815 = ssub.s32 128, 128
      %816 = vsyncadd [#allocation4], %s815
      %s818 = sshll.u32 [#allocation14], 4
      %s819 = int_to_ptr.vmem [resolvable:$true] %s818
      %821 = dma.vmem_to_hbm [thread:$0]  %s819, 128, %s13, [#allocation4]
    $region85: #{tpu_custom_call.1} parent=1 // pred_fallthru
      _
    // Predicated region
    $region86: #{tpu_custom_call.1} parent=1 // pred_check
      _
    $region87: #{tpu_custom_call.1} parent=1 // pred_check_branch
      %823 = sbr.rel (0) target = $region89
    $region88: #{tpu_custom_call.1} parent=1 // pred_region
      %824 = dma.done [#allocation4], 128
    $region89: #{tpu_custom_call.1} parent=1 // pred_fallthru
      _
    %825 = vsyncpa [#allocation3], 1
    %826 = vsyncpa [#allocation6], 1
    %827 = vsyncpa [#allocation9], 1
    %828 = vsyncpa [#allocation12], 1
    %829 = vsyncpa [#allocation4], 1

</llo_original>
